<compile_context>
chip_gen: v7x
topology: tpu7x:2x2x1
jax: 0.10.0
libtpu: 0.0.40
codegen_flags: <defaults>
</compile_context>

<pallas_src>
import functools

import jax
import jax.numpy as jnp
from jax import lax
from jax.experimental import pallas as pl
from jax.experimental.pallas import tpu as pltpu


def _mtp_loss_kernel(aux_ref, traj_ref, out_ref, *, M, num_pts, B):
    """One batch tile: emit un-normalized partial loss sums [1,1,4] for this block.

    aux_ref : [TB, M + F]  = concat(pred_cls [TB,M], gt_flat [TB,F])
    traj_ref: [TB, M * F]
    out_ref : [1, 1, 4]    lane 0 = sum(cls), lanes 1..3 = sum(reg per coord)
    """
    f32 = jnp.float32
    TB = aux_ref.shape[0]
    F = num_pts * 3
    MF = M * F
    eps2 = jnp.float32(1e-16)  # CosineSimilarity eps=1e-8, clamp in squared form

    aux = aux_ref[...].astype(f32)                              # [TB, M+F]
    pcls = aux[:, :M]                                           # [TB, M]
    gt = aux[:, M:]                                             # [TB, F]
    traj = traj_ref[...].astype(f32)                            # [TB, MF] single full-width cast

    # ---- constant selectors (tiny, built from iota; no data dependence) -----
    ri = lax.broadcasted_iota(jnp.int32, (MF, M), 0)
    mi = lax.broadcasted_iota(jnp.int32, (MF, M), 1)
    # end_sel[r, m] = 1 iff column r is one of anchor m's 3 endpoint coords.
    end_sel = ((ri >= mi * F + (num_pts - 1) * 3) & (ri < (mi + 1) * F)).astype(f32)

    r4 = lax.broadcasted_iota(jnp.int32, (MF, 4), 0)
    c4 = lax.broadcasted_iota(jnp.int32, (MF, 4), 1)
    # coord_sel4[r, c] = 1 iff coordinate (r mod 3) maps to output lane c = (r%3)+1.
    coord_sel4 = ((r4 % 3) + 1 == c4).astype(f32)               # [MF, 4], lane 0 stays empty

    # ---- broadcast gt across anchors (exact, lane concat) -------------------
    gt_tiled = jnp.concatenate([gt] * M, axis=1)                # [TB, MF]

    # ---- endpoint "argmin of cosine distance" == argmax of pdot/||pe|| ------
    pdot_m = jnp.dot(traj * gt_tiled, end_sel, preferred_element_type=f32)   # [TB, M]
    pe_ss_m = jnp.dot(traj * traj, end_sel, preferred_element_type=f32)      # [TB, M]
    score = pdot_m * lax.rsqrt(jnp.maximum(pe_ss_m, eps2))                   # [TB, M]
    # TODO(synk): rows whose endpoint scores are all NaN fall back to anchor 0
    # (torch.argmin would return an implementation-defined index there).
    score = jnp.where(jnp.isnan(score), -jnp.inf, score)
    best = jnp.max(score, axis=1, keepdims=True)                             # [TB, 1]
    col_m = lax.broadcasted_iota(jnp.int32, (TB, M), 1)
    # first-occurrence argmax == torch.argmin first-occurrence tie break
    idx = jnp.min(jnp.where(score >= best, col_m, M), axis=1, keepdims=True) # [TB, 1] int32

    # ---- cross-entropy pieces (full-width [TB, M]) ---------------------------
    onehot_m = (col_m == idx).astype(f32)                                    # [TB, M]
    picked = jnp.sum(pcls * onehot_m, axis=1, keepdims=True)                 # [TB, 1]
    mx = jnp.max(pcls, axis=1, keepdims=True)
    lse = mx + jnp.log(jnp.sum(jnp.exp(pcls - mx), axis=1, keepdims=True))   # [TB, 1]

    # ---- SmoothL1 (beta=1) over all anchors, winner-masked, per-coord reduce -
    diff = traj - gt_tiled
    ad = jnp.abs(diff)
    l = jnp.where(ad < 1.0, 0.5 * diff * diff, ad - 0.5)                     # [TB, MF]
    col_mf = lax.broadcasted_iota(jnp.int32, (TB, MF), 1)
    lo = idx * F
    onehot_f = ((col_mf >= lo) & (col_mf < lo + F)).astype(f32)              # [TB, MF]
    reg4 = jnp.dot(l * onehot_f, coord_sel4, preferred_element_type=f32)     # [TB, 4], lane 0 = 0

    # ---- pack cls into lane 0, mask wrapper-padded rows, row-sum -------------
    row = lax.broadcasted_iota(jnp.int32, (TB, 1), 0) + pl.program_id(0) * TB
    valid = row < B                                                          # [TB, 1]
    lane4 = lax.broadcasted_iota(jnp.int32, (TB, 4), 1)
    slab = jnp.where(lane4 == 0, lse - picked, reg4)                         # [TB, 4]
    slab = jnp.where(valid, slab, 0.0)
    out_ref[...] = jnp.sum(slab, axis=0, keepdims=True).reshape(1, 1, 4)


def mtp_loss(pred_cls, pred_trajectory, gt, *, M, num_pts, block_b=2048, min_blocks=1):
    """pred_cls [B, M], pred_trajectory [B, M*num_pts*3], gt [B, num_pts, 3].

    block_b: batch tile (multiple of 8).  At M=5, num_pts=8 the padded,
    double-buffered inputs cost ~1 KiB/row, so block_b up to ~8192 fits the
    32 MiB scoped-VMEM limit on every generation; sweep 1024..4096 on v7x and
    1024..8192 on v5e/v6e.
    min_blocks: set >=2 on v7x so the "parallel" grid axis gives both
    TensorCores work even when one block would cover the whole batch.
    """
    B = pred_cls.shape[0]
    F = num_pts * 3
    assert pred_trajectory.shape == (B, M * F)
    assert gt.shape == (B, num_pts, 3)
    gt_flat = gt.reshape(B, F)

    # Merge the two narrow inputs into one stream (storage dtype, no f32 upcast).
    aux_dtype = jnp.promote_types(pred_cls.dtype, gt_flat.dtype)
    aux = jnp.concatenate([pred_cls.astype(aux_dtype), gt_flat.astype(aux_dtype)], axis=1)

    # Tile size: full batch if it fits in one block, else block_b (multiple of 8).
    if B <= block_b:
        TB = B
        if min_blocks > 1 and B > 8 * min_blocks:          # v7x: shard across 2 TCs
            TB = ((-(-B // min_blocks) + 7) // 8) * 8
    else:
        assert block_b % 8 == 0, "block_b must be a multiple of 8"
        TB = block_b
    G = -(-B // TB)
    Bp = G * TB
    if Bp != B:  # pad with zeros; kernel masks the padded rows out of the sums
        pad = Bp - B
        aux = jnp.pad(aux, ((0, pad), (0, 0)))
        pred_trajectory = jnp.pad(pred_trajectory, ((0, pad), (0, 0)))

    kernel = functools.partial(_mtp_loss_kernel, M=M, num_pts=num_pts, B=B)

    # Advisory cost so XLA can overlap this mostly memory-bound call.
    bytes_accessed = int(
        B * M * F * jnp.dtype(pred_trajectory.dtype).itemsize
        + B * (M + F) * jnp.dtype(aux.dtype).itemsize
        + G * 4 * 4)
    flops = int(B * (4 * M * F * M + 2 * M * F * 4 + 16 * M * F + 16 * M))
    transcendentals = int(B * (2 * M + 1))

    parts = pl.pallas_call(
        kernel,
        grid=(G,),
        in_specs=[
            pl.BlockSpec((TB, M + F), lambda i: (i, 0)),
            pl.BlockSpec((TB, M * F), lambda i: (i, 0)),
        ],
        out_specs=pl.BlockSpec((1, 1, 4), lambda i: (i, 0, 0)),
        out_shape=jax.ShapeDtypeStruct((G, 1, 4), jnp.float32),
        compiler_params=pltpu.CompilerParams(
            dimension_semantics=("parallel",),              # independent blocks -> megacore
            vmem_limit_bytes=32 * 1024 * 1024,
        ),
        cost_estimate=pl.CostEstimate(
            flops=flops, transcendentals=transcendentals, bytes_accessed=bytes_accessed),
    )(aux, pred_trajectory)

    # Tiny final reduce + normalization in JAX (G*4 floats).
    parts = parts.reshape(G, 4)
    cls_loss = jnp.sum(parts[:, 0]) / jnp.float32(B)
    reg_loss = jnp.sum(parts[:, 1:4], axis=0) / jnp.float32(B * num_pts)
    return cls_loss, reg_loss


def _reference(pred_cls, pred_trajectory, gt, *, M, num_pts):
    """Pure-JAX reference mirroring the PyTorch module."""
    B = pred_cls.shape[0]
    pt = pred_trajectory.reshape(B, M, num_pts, 3)
    pe = pt[:, :, num_pts - 1, :]
    ge = gt[:, num_pts - 1, :][:, None, :]
    eps = 1e-8
    cos = jnp.sum(pe * ge, -1) / (
        jnp.maximum(jnp.linalg.norm(pe, axis=-1), eps)
        * jnp.maximum(jnp.linalg.norm(ge, axis=-1), eps))
    idx = jnp.argmin(1 - cos, axis=1)
    sel = pt[jnp.arange(B), idx]
    logp = jax.nn.log_softmax(pred_cls, axis=1)
    cls_loss = -jnp.mean(logp[jnp.arange(B), idx])
    d = sel - gt
    ad = jnp.abs(d)
    l = jnp.where(ad < 1.0, 0.5 * d * d, ad - 0.5)
    return cls_loss, l.mean(axis=(0, 1))


if __name__ == "__main__":
    alpha, M, num_pts = 0.5, 5, 8  # alpha unused in forward
    keys = jax.random.split(jax.random.PRNGKey(0), 6)

    # --- config 1: small batch, single block ---------------------------------
    B = 4
    pred_cls = jax.random.normal(keys[0], (B, M), dtype=jnp.float32)
    pred_trajectory = jax.random.normal(keys[1], (B, M * num_pts * 3), dtype=jnp.float32)
    gt = jax.random.normal(keys[2], (B, num_pts, 3), dtype=jnp.float32)

    cls_loss, reg_loss = mtp_loss(pred_cls, pred_trajectory, gt, M=M, num_pts=num_pts)
    jax.block_until_ready((cls_loss, reg_loss))
    ref_cls, ref_reg = _reference(pred_cls, pred_trajectory, gt, M=M, num_pts=num_pts)
    assert jnp.allclose(cls_loss, ref_cls, rtol=1e-4, atol=2e-5), (cls_loss, ref_cls)
    assert jnp.allclose(reg_loss, ref_reg, rtol=1e-4, atol=2e-5), (reg_loss, ref_reg)

    # --- config 2: multi-block grid + padded/masked last block ---------------
    B2 = 37  # not a multiple of the 16-row tile -> exercises padding + masking
    pred_cls2 = jax.random.normal(keys[3], (B2, M), dtype=jnp.float32)
    pred_trajectory2 = jax.random.normal(keys[4], (B2, M * num_pts * 3), dtype=jnp.float32)
    gt2 = jax.random.normal(keys[5], (B2, num_pts, 3), dtype=jnp.float32)

    cls_loss2, reg_loss2 = mtp_loss(pred_cls2, pred_trajectory2, gt2,
                                    M=M, num_pts=num_pts, block_b=16)
    jax.block_until_ready((cls_loss2, reg_loss2))
    ref_cls2, ref_reg2 = _reference(pred_cls2, pred_trajectory2, gt2, M=M, num_pts=num_pts)
    assert jnp.allclose(cls_loss2, ref_cls2, rtol=1e-4, atol=2e-5), (cls_loss2, ref_cls2)
    assert jnp.allclose(reg_loss2, ref_reg2, rtol=1e-4, atol=2e-5), (reg_loss2, ref_reg2)

    print("KERNEL_OK")
</pallas_src>

<mosaic_0001>
module attributes {stable_mosaic.version = 11 : i64} {
  func.func @_mtp_loss_kernel(%arg0: i32, %arg1: memref<4x29xf32, #tpu.memory_space<vmem>>, %arg2: memref<4x120xf32, #tpu.memory_space<vmem>>, %arg3: memref<1x1x4xf32, #tpu.memory_space<vmem>>) attributes {dimension_semantics = [#tpu.dimension_semantics<parallel>], iteration_bounds = array<i64: 1>, scalar_prefetch = 0 : i64, scratch_operands = 0 : i64, tpu.core_type = #tpu.core_type<tc>, window_params = [{transform_indices = @transform_0, window_bounds = array<i64: 4, 29>}, {transform_indices = @transform_1, window_bounds = array<i64: 4, 120>}, {transform_indices = @transform_2, window_bounds = array<i64: 1, 1, 4>}]} {
    %c0 = arith.constant 0 : index
    %c0_0 = arith.constant 0 : index
    %0 = vector.load %arg1[%c0, %c0_0] : memref<4x29xf32, #tpu.memory_space<vmem>>, vector<4x29xf32>
    %1 = vector.extract_strided_slice %0 {offsets = [0, 0], sizes = [4, 5], strides = [1, 1]} : vector<4x29xf32> to vector<4x5xf32>
    %2 = vector.extract_strided_slice %0 {offsets = [0, 5], sizes = [4, 24], strides = [1, 1]} : vector<4x29xf32> to vector<4x24xf32>
    %c0_1 = arith.constant 0 : index
    %c0_2 = arith.constant 0 : index
    %3 = vector.load %arg2[%c0_1, %c0_2] : memref<4x120xf32, #tpu.memory_space<vmem>>, vector<4x120xf32>
    %4 = tpu.iota {dimensions = array<i32: 0>} : vector<120x5xi32>
    %5 = tpu.iota {dimensions = array<i32: 1>} : vector<120x5xi32>
    %c24_i32 = arith.constant 24 : i32
    %6 = vector.broadcast %c24_i32 : i32 to vector<120x5xi32>
    %7 = arith.muli %5, %6 : vector<120x5xi32>
    %c21_i32 = arith.constant 21 : i32
    %8 = vector.broadcast %c21_i32 : i32 to vector<120x5xi32>
    %9 = arith.addi %7, %8 : vector<120x5xi32>
    %10 = arith.cmpi sge, %4, %9 : vector<120x5xi32>
    %c1_i32 = arith.constant 1 : i32
    %11 = vector.broadcast %c1_i32 : i32 to vector<120x5xi32>
    %12 = arith.addi %5, %11 : vector<120x5xi32>
    %c24_i32_3 = arith.constant 24 : i32
    %13 = vector.broadcast %c24_i32_3 : i32 to vector<120x5xi32>
    %14 = arith.muli %12, %13 : vector<120x5xi32>
    %15 = arith.cmpi slt, %4, %14 : vector<120x5xi32>
    %16 = arith.andi %10, %15 : vector<120x5xi1>
    %17 = arith.extui %16 : vector<120x5xi1> to vector<120x5xi32>
    %18 = arith.sitofp %17 : vector<120x5xi32> to vector<120x5xf32>
    %19 = tpu.iota {dimensions = array<i32: 0>} : vector<120x4xi32>
    %20 = tpu.iota {dimensions = array<i32: 1>} : vector<120x4xi32>
    %c3_i32 = arith.constant 3 : i32
    %c0_i32 = arith.constant 0 : i32
    %21 = arith.cmpi eq, %c3_i32, %c0_i32 : i32
    %c1_i32_4 = arith.constant 1 : i32
    %22 = arith.select %21, %c1_i32_4, %c3_i32 : i32
    %23 = vector.broadcast %22 : i32 to vector<120x4xi32>
    %24 = arith.remsi %19, %23 : vector<120x4xi32>
    %c0_i32_5 = arith.constant 0 : i32
    %25 = vector.broadcast %c0_i32_5 : i32 to vector<120x4xi32>
    %26 = arith.cmpi ne, %24, %25 : vector<120x4xi32>
    %c0_i32_6 = arith.constant 0 : i32
    %27 = vector.broadcast %c0_i32_6 : i32 to vector<120x4xi32>
    %28 = arith.cmpi slt, %24, %27 : vector<120x4xi32>
    %c0_i32_7 = arith.constant 0 : i32
    %29 = arith.cmpi slt, %22, %c0_i32_7 : i32
    %30 = vector.broadcast %29 : i1 to vector<120x4xi1>
    %31 = vector.broadcast %30 : vector<120x4xi1> to vector<120x4xi1>
    %32 = arith.xori %28, %31 : vector<120x4xi1>
    %33 = arith.andi %32, %26 : vector<120x4xi1>
    %34 = vector.broadcast %22 : i32 to vector<120x4xi32>
    %35 = arith.addi %24, %34 : vector<120x4xi32>
    %36 = arith.select %33, %35, %24 : vector<120x4xi1>, vector<120x4xi32>
    %c1_i32_8 = arith.constant 1 : i32
    %37 = vector.broadcast %c1_i32_8 : i32 to vector<120x4xi32>
    %38 = arith.addi %36, %37 : vector<120x4xi32>
    %39 = arith.cmpi eq, %38, %20 : vector<120x4xi32>
    %40 = arith.extui %39 : vector<120x4xi1> to vector<120x4xi32>
    %41 = arith.sitofp %40 : vector<120x4xi32> to vector<120x4xf32>
    %42 = tpu.concatenate %2, %2, %2, %2, %2 in 1 : vector<4x24xf32>, vector<4x24xf32>, vector<4x24xf32>, vector<4x24xf32>, vector<4x24xf32> -> vector<4x120xf32>
    %43 = arith.mulf %3, %42 : vector<4x120xf32>
    %cst = arith.constant dense<0.000000e+00> : vector<4x5xf32>
    %44 = tpu.matmul %43, %18, %cst {dimension_numbers = #tpu.dot_dimension_numbers<[1], [0], [0], [1], [0, 0, 1, 1], [], []>} : vector<4x120xf32>, vector<120x5xf32>, vector<4x5xf32> -> vector<4x5xf32>
    %45 = arith.mulf %3, %3 : vector<4x120xf32>
    %cst_9 = arith.constant dense<0.000000e+00> : vector<4x5xf32>
    %46 = tpu.matmul %45, %18, %cst_9 {dimension_numbers = #tpu.dot_dimension_numbers<[1], [0], [0], [1], [0, 0, 1, 1], [], []>} : vector<4x120xf32>, vector<120x5xf32>, vector<4x5xf32> -> vector<4x5xf32>
    %cst_10 = arith.constant 1.000000e-16 : f32
    %47 = vector.broadcast %cst_10 : f32 to vector<4x5xf32>
    %48 = arith.maximumf %46, %47 : vector<4x5xf32>
    %49 = math.rsqrt %48 : vector<4x5xf32>
    %50 = arith.mulf %44, %49 : vector<4x5xf32>
    %51 = arith.cmpf one, %50, %50 : vector<4x5xf32>
    %cst_11 = arith.constant 0xFF800000 : f32
    %52 = vector.broadcast %cst_11 : f32 to vector<4x5xf32>
    %53 = arith.select %51, %52, %50 : vector<4x5xi1>, vector<4x5xf32>
    %cst_12 = arith.constant dense<0xFF800000> : vector<4xf32>
    %54 = vector.multi_reduction <maximumf>, %53, %cst_12 [1] : vector<4x5xf32> to vector<4xf32>
    %55 = vector.shape_cast %54 : vector<4xf32> to vector<4x1xf32>
    %56 = tpu.iota {dimensions = array<i32: 1>} : vector<4x5xi32>
    %57 = vector.broadcast %55 : vector<4x1xf32> to vector<4x5xf32>
    %58 = arith.cmpf oge, %53, %57 : vector<4x5xf32>
    %c5_i32 = arith.constant 5 : i32
    %59 = vector.broadcast %c5_i32 : i32 to vector<4x5xi32>
    %60 = arith.select %58, %56, %59 : vector<4x5xi1>, vector<4x5xi32>
    %cst_13 = arith.constant dense<2147483647> : vector<4xi32>
    %61 = vector.multi_reduction <minsi>, %60, %cst_13 [1] : vector<4x5xi32> to vector<4xi32>
    %62 = vector.shape_cast %61 : vector<4xi32> to vector<4x1xi32>
    %63 = vector.broadcast %62 : vector<4x1xi32> to vector<4x5xi32>
    %64 = arith.cmpi eq, %56, %63 : vector<4x5xi32>
    %65 = arith.extui %64 : vector<4x5xi1> to vector<4x5xi32>
    %66 = arith.sitofp %65 : vector<4x5xi32> to vector<4x5xf32>
    %67 = arith.mulf %1, %66 : vector<4x5xf32>
    %cst_14 = arith.constant dense<0.000000e+00> : vector<4xf32>
    %68 = vector.multi_reduction <add>, %67, %cst_14 [1] : vector<4x5xf32> to vector<4xf32>
    %69 = vector.shape_cast %68 : vector<4xf32> to vector<4x1xf32>
    %cst_15 = arith.constant dense<0xFF800000> : vector<4xf32>
    %70 = vector.multi_reduction <maximumf>, %1, %cst_15 [1] : vector<4x5xf32> to vector<4xf32>
    %71 = vector.shape_cast %70 : vector<4xf32> to vector<4x1xf32>
    %72 = vector.broadcast %71 : vector<4x1xf32> to vector<4x5xf32>
    %73 = arith.subf %1, %72 : vector<4x5xf32>
    %74 = math.exp %73 : vector<4x5xf32>
    %cst_16 = arith.constant dense<0.000000e+00> : vector<4xf32>
    %75 = vector.multi_reduction <add>, %74, %cst_16 [1] : vector<4x5xf32> to vector<4xf32>
    %76 = vector.shape_cast %75 : vector<4xf32> to vector<4x1xf32>
    %77 = math.log %76 : vector<4x1xf32>
    %78 = arith.addf %71, %77 : vector<4x1xf32>
    %79 = arith.subf %3, %42 : vector<4x120xf32>
    %80 = math.absf %79 : vector<4x120xf32>
    %cst_17 = arith.constant 1.000000e+00 : f32
    %81 = vector.broadcast %cst_17 : f32 to vector<4x120xf32>
    %82 = arith.cmpf olt, %80, %81 : vector<4x120xf32>
    %cst_18 = arith.constant 5.000000e-01 : f32
    %83 = vector.broadcast %cst_18 : f32 to vector<4x120xf32>
    %84 = arith.mulf %83, %79 : vector<4x120xf32>
    %85 = arith.mulf %84, %79 : vector<4x120xf32>
    %cst_19 = arith.constant 5.000000e-01 : f32
    %86 = vector.broadcast %cst_19 : f32 to vector<4x120xf32>
    %87 = arith.subf %80, %86 : vector<4x120xf32>
    %88 = arith.select %82, %85, %87 : vector<4x120xi1>, vector<4x120xf32>
    %89 = tpu.iota {dimensions = array<i32: 1>} : vector<4x120xi32>
    %c24_i32_20 = arith.constant 24 : i32
    %90 = vector.broadcast %c24_i32_20 : i32 to vector<4x1xi32>
    %91 = arith.muli %62, %90 : vector<4x1xi32>
    %92 = vector.broadcast %91 : vector<4x1xi32> to vector<4x120xi32>
    %93 = arith.cmpi sge, %89, %92 : vector<4x120xi32>
    %c24_i32_21 = arith.constant 24 : i32
    %94 = vector.broadcast %c24_i32_21 : i32 to vector<4x1xi32>
    %95 = arith.addi %91, %94 : vector<4x1xi32>
    %96 = vector.broadcast %95 : vector<4x1xi32> to vector<4x120xi32>
    %97 = arith.cmpi slt, %89, %96 : vector<4x120xi32>
    %98 = arith.andi %93, %97 : vector<4x120xi1>
    %99 = arith.extui %98 : vector<4x120xi1> to vector<4x120xi32>
    %100 = arith.sitofp %99 : vector<4x120xi32> to vector<4x120xf32>
    %101 = arith.mulf %88, %100 : vector<4x120xf32>
    %cst_22 = arith.constant dense<0.000000e+00> : vector<4x4xf32>
    %102 = tpu.matmul %101, %41, %cst_22 {dimension_numbers = #tpu.dot_dimension_numbers<[1], [0], [0], [1], [0, 0, 1, 1], [], []>} : vector<4x120xf32>, vector<120x4xf32>, vector<4x4xf32> -> vector<4x4xf32>
    %103 = tpu.iota {dimensions = array<i32: 0>} : vector<4x1xi32>
    %c4_i32 = arith.constant 4 : i32
    %104 = arith.muli %arg0, %c4_i32 : i32
    %105 = vector.broadcast %104 : i32 to vector<4x1xi32>
    %106 = arith.addi %103, %105 : vector<4x1xi32>
    %c4_i32_23 = arith.constant 4 : i32
    %107 = vector.broadcast %c4_i32_23 : i32 to vector<4x1xi32>
    %108 = arith.cmpi slt, %106, %107 : vector<4x1xi32>
    %109 = tpu.iota {dimensions = array<i32: 1>} : vector<4x4xi32>
    %c0_i32_24 = arith.constant 0 : i32
    %110 = vector.broadcast %c0_i32_24 : i32 to vector<4x4xi32>
    %111 = arith.cmpi eq, %109, %110 : vector<4x4xi32>
    %112 = arith.subf %78, %69 : vector<4x1xf32>
    %113 = vector.shape_cast %112 : vector<4x1xf32> to vector<4x1xf32>
    %114 = vector.broadcast %113 : vector<4x1xf32> to vector<4x4xf32>
    %115 = arith.select %111, %114, %102 : vector<4x4xi1>, vector<4x4xf32>
    %cst_25 = arith.constant 0.000000e+00 : f32
    %116 = vector.shape_cast %108 : vector<4x1xi1> to vector<4x1xi1>
    %117 = vector.broadcast %116 : vector<4x1xi1> to vector<4x4xi1>
    %118 = vector.broadcast %cst_25 : f32 to vector<4x4xf32>
    %119 = arith.select %117, %115, %118 : vector<4x4xi1>, vector<4x4xf32>
    %cst_26 = arith.constant dense<0.000000e+00> : vector<4xf32>
    %120 = vector.multi_reduction <add>, %119, %cst_26 [0] : vector<4x4xf32> to vector<4xf32>
    %121 = vector.shape_cast %120 : vector<4xf32> to vector<1x4xf32>
    %122 = vector.shape_cast %121 : vector<1x4xf32> to vector<1x1x4xf32>
    %c0_27 = arith.constant 0 : index
    %c0_28 = arith.constant 0 : index
    %c0_29 = arith.constant 0 : index
    %123 = vector.load %arg3[%c0_27, %c0_28, %c0_29] : memref<1x1x4xf32, #tpu.memory_space<vmem>>, vector<1x1x4xf32>
    tpu.vector_store %arg3[%c0_27, %c0_28, %c0_29], %122 {strides = array<i32>} : memref<1x1x4xf32, #tpu.memory_space<vmem>>, vector<1x1x4xf32>,
    return
  }
  func.func @transform_0(%arg0: i32) -> (i32, i32) {
    %c0_i32 = arith.constant 0 : i32
    %c0_i32_0 = arith.constant 0 : i32
    return %arg0, %c0_i32 : i32, i32
  }
  func.func @transform_1(%arg0: i32) -> (i32, i32) {
    %c0_i32 = arith.constant 0 : i32
    %c0_i32_0 = arith.constant 0 : i32
    return %arg0, %c0_i32 : i32, i32
  }
  func.func @transform_2(%arg0: i32) -> (i32, i32, i32) {
    %c0_i32 = arith.constant 0 : i32
    %c0_i32_0 = arith.constant 0 : i32
    %c0_i32_1 = arith.constant 0 : i32
    return %arg0, %c0_i32, %c0_i32_0 : i32, i32, i32
  }
}

</mosaic_0001>

<llo_original>
// kernel: tpu_custom_call.1
$region0: #{tpu_custom_call.1}
  #allocation0 [shape = 'u32[]', space=smem, size = 0x4, offset = 0x4, fixed_abs, tag = 'smem constant byte address 0x4 - core index']
  #allocation1 [shape = 'u32[144,128]{1,0:T(1,128)}', space=vmem, size = 0x12000, scoped, tag = 'internal scratch']
  %s0 = inlined_call_operand.hbm [shape: f32[4,29], index: 0, kind: input, shape index: {}]
  %s1 = inlined_call_operand.hbm [shape: f32[4,120], index: 1, kind: input, shape index: {}]
  %s2 = inlined_call_operand.hbm [shape: f32[1,1,4], index: 2, kind: output, shape index: {}]
  %s3 = sld [smem:[#allocation0]]
  $region26: #{tpu_custom_call.1} parent=0
    _
  %s5 = ssub.s32 1, %s3
  %s6 = scalar_select 0, %s5, %s3
  $region1: #{tpu_custom_call.1} parent=0
    #allocation2 [shape = 'u8[2048]{0}', space=vmem, size = 0x800, scoped, tag = 'input window, operand 0, single buffered']
    #allocation3 [shape = 's32[1]{0}', space=sflag, size = 0x4, scoped, tag = 'scoped memory for tpu_custom_call.1']
    #allocation4 [shape = 's32[1]{0}', space=sflag, size = 0x4, scoped, tag = 'scoped memory for tpu_custom_call.1']
    #allocation5 [shape = 'u8[2048]{0}', space=vmem, size = 0x800, scoped, tag = 'input window, operand 1, single buffered']
    #allocation6 [shape = 's32[1]{0}', space=sflag, size = 0x4, scoped, tag = 'scoped memory for tpu_custom_call.1']
    #allocation7 [shape = 'u8[512]{0}', space=vmem, size = 0x400, scoped, tag = 'output window, operand 0, single buffered']
    %7 = vsyncpa [#allocation3], 0
    %8 = vsyncpa [#allocation6], 0
    %9 = vsyncpa [#allocation4], 0
    // Predicated region
    $region2: #{tpu_custom_call.1} parent=1 // pred_check
      _
    $region3: #{tpu_custom_call.1} parent=1 // pred_check_branch
      %11 = sbr.rel (0) target = $region5
    $region4: #{tpu_custom_call.1} parent=1 // pred_region
      %s13 = ssub.s32 64, 64
      %14 = vsyncadd [#allocation3], %s13
      %s16 = sshll.u32 [#allocation2], 4
      %s17 = int_to_ptr.vmem [resolvable:$true] %s16
      %19 = dma.hbm_to_vmem [thread:$0]  %s0, 64, %s17, [#allocation3]
    $region5: #{tpu_custom_call.1} parent=1 // pred_fallthru
      _
    // Predicated region
    $region6: #{tpu_custom_call.1} parent=1 // pred_check
      _
    $region7: #{tpu_custom_call.1} parent=1 // pred_check_branch
      %21 = sbr.rel (0) target = $region9
    $region8: #{tpu_custom_call.1} parent=1 // pred_region
      %s23 = ssub.s32 64, 64
      %24 = vsyncadd [#allocation6], %s23
      %s26 = sshll.u32 [#allocation5], 4
      %s27 = int_to_ptr.vmem [resolvable:$true] %s26
      %29 = dma.hbm_to_vmem [thread:$0]  %s1, 64, %s27, [#allocation6]
    $region9: #{tpu_custom_call.1} parent=1 // pred_fallthru
      _
    // Predicated region
    $region10: #{tpu_custom_call.1} parent=1 // pred_check
      _
    $region11: #{tpu_custom_call.1} parent=1 // pred_check_branch
      %31 = sbr.rel (0) target = $region13
    $region12: #{tpu_custom_call.1} parent=1 // pred_region
      %32 = dma.done [#allocation3], 64
    $region13: #{tpu_custom_call.1} parent=1 // pred_fallthru
      _
    // Predicated region
    $region14: #{tpu_custom_call.1} parent=1 // pred_check
      _
    $region15: #{tpu_custom_call.1} parent=1 // pred_check_branch
      %34 = sbr.rel (0) target = $region17
    $region16: #{tpu_custom_call.1} parent=1 // pred_region
      %35 = dma.done [#allocation6], 64
    $region17: #{tpu_custom_call.1} parent=1 // pred_fallthru
      _
    %v36 = vld [vmem:[#allocation2] sm:$0xf]
    %v37 = vld [vmem:[#allocation5] sm:$0xf]
    %v38 = vlaneseq
    %v39 = vshrl.u32 %v38, 7
    %v40 = vadd.s32 %v39, 8
    %v41 = vadd.s32 %v39, 16
    %v42 = vadd.s32 %v39, 24
    %v43 = vadd.s32 %v39, 32
    %v44 = vadd.s32 %v39, 40
    %v45 = vadd.s32 %v39, 48
    %v46 = vadd.s32 %v39, 56
    %v47 = vadd.s32 %v39, 64
    %v48 = vadd.s32 %v39, 72
    %v49 = vadd.s32 %v39, 80
    %v50 = vadd.s32 %v39, 88
    %v51 = vadd.s32 %v39, 96
    %v52 = vadd.s32 %v39, 104
    %v53 = vadd.s32 %v39, 112
    %v54 = vlaneseq
    %v55 = vand.u32 %v54, 127
    %v56 = vmul.u32 %v55, 24
    %v57 = vadd.s32 %v56, 21
    %vm58 = vcmp.ge.s32.totalorder %v39, %v57
    %vm59 = vcmp.ge.s32.totalorder %v40, %v57
    %vm60 = vcmp.ge.s32.totalorder %v41, %v57
    %vm61 = vcmp.ge.s32.totalorder %v42, %v57
    %vm62 = vcmp.ge.s32.totalorder %v43, %v57
    %vm63 = vcmp.ge.s32.totalorder %v44, %v57
    %vm64 = vcmp.ge.s32.totalorder %v45, %v57
    %vm65 = vcmp.ge.s32.totalorder %v46, %v57
    %vm66 = vcmp.ge.s32.totalorder %v47, %v57
    %vm67 = vcmp.ge.s32.totalorder %v48, %v57
    %vm68 = vcmp.ge.s32.totalorder %v49, %v57
    %vm69 = vcmp.ge.s32.totalorder %v50, %v57
    %vm70 = vcmp.ge.s32.totalorder %v51, %v57
    %vm71 = vcmp.ge.s32.totalorder %v52, %v57
    %vm72 = vcmp.ge.s32.totalorder %v53, %v57
    %v73 = vadd.s32 %v55, 1
    %v74 = vmul.u32 %v73, 24
    %vm75 = vcmp.lt.s32.totalorder %v39, %v74
    %vm76 = vcmp.lt.s32.totalorder %v40, %v74
    %vm77 = vcmp.lt.s32.totalorder %v41, %v74
    %vm78 = vcmp.lt.s32.totalorder %v42, %v74
    %vm79 = vcmp.lt.s32.totalorder %v43, %v74
    %vm80 = vcmp.lt.s32.totalorder %v44, %v74
    %vm81 = vcmp.lt.s32.totalorder %v45, %v74
    %vm82 = vcmp.lt.s32.totalorder %v46, %v74
    %vm83 = vcmp.lt.s32.totalorder %v47, %v74
    %vm84 = vcmp.lt.s32.totalorder %v48, %v74
    %vm85 = vcmp.lt.s32.totalorder %v49, %v74
    %vm86 = vcmp.lt.s32.totalorder %v50, %v74
    %vm87 = vcmp.lt.s32.totalorder %v51, %v74
    %vm88 = vcmp.lt.s32.totalorder %v52, %v74
    %vm89 = vcmp.lt.s32.totalorder %v53, %v74
    %vm90 = vmand %vm58, %vm75
    %vm91 = vmand %vm59, %vm76
    %vm92 = vmand %vm60, %vm77
    %vm93 = vmand %vm61, %vm78
    %vm94 = vmand %vm62, %vm79
    %vm95 = vmand %vm63, %vm80
    %vm96 = vmand %vm64, %vm81
    %vm97 = vmand %vm65, %vm82
    %vm98 = vmand %vm66, %vm83
    %vm99 = vmand %vm67, %vm84
    %vm100 = vmand %vm68, %vm85
    %vm101 = vmand %vm69, %vm86
    %vm102 = vmand %vm70, %vm87
    %vm103 = vmand %vm71, %vm88
    %vm104 = vmand %vm72, %vm89
    %v105 = vsel %vm90, 1, 0
    %v106 = vsel %vm91, 1, 0
    %v107 = vsel %vm92, 1, 0
    %v108 = vsel %vm93, 1, 0
    %v109 = vsel %vm94, 1, 0
    %v110 = vsel %vm95, 1, 0
    %v111 = vsel %vm96, 1, 0
    %v112 = vsel %vm97, 1, 0
    %v113 = vsel %vm98, 1, 0
    %v114 = vsel %vm99, 1, 0
    %v115 = vsel %vm100, 1, 0
    %v116 = vsel %vm101, 1, 0
    %v117 = vsel %vm102, 1, 0
    %v118 = vsel %vm103, 1, 0
    %v119 = vsel %vm104, 1, 0
    %v120 = vcvt.s32.f32 %v105
    %v121 = vcvt.s32.f32 %v106
    %v122 = vcvt.s32.f32 %v107
    %v123 = vcvt.s32.f32 %v108
    %v124 = vcvt.s32.f32 %v109
    %v125 = vcvt.s32.f32 %v110
    %v126 = vcvt.s32.f32 %v111
    %v127 = vcvt.s32.f32 %v112
    %v128 = vcvt.s32.f32 %v113
    %v129 = vcvt.s32.f32 %v114
    %v130 = vcvt.s32.f32 %v115
    %v131 = vcvt.s32.f32 %v116
    %v132 = vcvt.s32.f32 %v117
    %v133 = vcvt.s32.f32 %v118
    %v134 = vcvt.s32.f32 %v119
    %vm135 = vcmp.lt.s32.totalorder %v39, 0
    %v136 = vsub.s32 0, %v39
    %v137 = vsel %vm135, %v136, %v39
    %v138 = vmul.u32.u64.compose %v137, 2863311531
    %v139 = vextract.low.u32 %v138
    %v140 = vextract.high.u32 %v138
    %v141 = vshrl.u32 %v140, 1
    %v142 = vmul.u32 %v141, 3
    %v143 = vsub.s32 %v137, %v142
    %v144 = vsub.s32 0, %v143
    %v145 = vsel %vm135, %v144, %v143
    %vm146 = vcmp.lt.s32.totalorder %v40, 0
    %v147 = vsub.s32 0, %v40
    %v148 = vsel %vm146, %v147, %v40
    %v149 = vmul.u32.u64.compose %v148, 2863311531
    %v150 = vextract.low.u32 %v149
    %v151 = vextract.high.u32 %v149
    %v152 = vshrl.u32 %v151, 1
    %v153 = vmul.u32 %v152, 3
    %v154 = vsub.s32 %v148, %v153
    %v155 = vsub.s32 0, %v154
    %v156 = vsel %vm146, %v155, %v154
    %vm157 = vcmp.lt.s32.totalorder %v41, 0
    %v158 = vsub.s32 0, %v41
    %v159 = vsel %vm157, %v158, %v41
    %v160 = vmul.u32.u64.compose %v159, 2863311531
    %v161 = vextract.low.u32 %v160
    %v162 = vextract.high.u32 %v160
    %v163 = vshrl.u32 %v162, 1
    %v164 = vmul.u32 %v163, 3
    %v165 = vsub.s32 %v159, %v164
    %v166 = vsub.s32 0, %v165
    %v167 = vsel %vm157, %v166, %v165
    %vm168 = vcmp.lt.s32.totalorder %v42, 0
    %v169 = vsub.s32 0, %v42
    %v170 = vsel %vm168, %v169, %v42
    %v171 = vmul.u32.u64.compose %v170, 2863311531
    %v172 = vextract.low.u32 %v171
    %v173 = vextract.high.u32 %v171
    %v174 = vshrl.u32 %v173, 1
    %v175 = vmul.u32 %v174, 3
    %v176 = vsub.s32 %v170, %v175
    %v177 = vsub.s32 0, %v176
    %v178 = vsel %vm168, %v177, %v176
    %vm179 = vcmp.lt.s32.totalorder %v43, 0
    %v180 = vsub.s32 0, %v43
    %v181 = vsel %vm179, %v180, %v43
    %v182 = vmul.u32.u64.compose %v181, 2863311531
    %v183 = vextract.low.u32 %v182
    %v184 = vextract.high.u32 %v182
    %v185 = vshrl.u32 %v184, 1
    %v186 = vmul.u32 %v185, 3
    %v187 = vsub.s32 %v181, %v186
    %v188 = vsub.s32 0, %v187
    %v189 = vsel %vm179, %v188, %v187
    %vm190 = vcmp.lt.s32.totalorder %v44, 0
    %v191 = vsub.s32 0, %v44
    %v192 = vsel %vm190, %v191, %v44
    %v193 = vmul.u32.u64.compose %v192, 2863311531
    %v194 = vextract.low.u32 %v193
    %v195 = vextract.high.u32 %v193
    %v196 = vshrl.u32 %v195, 1
    %v197 = vmul.u32 %v196, 3
    %v198 = vsub.s32 %v192, %v197
    %v199 = vsub.s32 0, %v198
    %v200 = vsel %vm190, %v199, %v198
    %vm201 = vcmp.lt.s32.totalorder %v45, 0
    %v202 = vsub.s32 0, %v45
    %v203 = vsel %vm201, %v202, %v45
    %v204 = vmul.u32.u64.compose %v203, 2863311531
    %v205 = vextract.low.u32 %v204
    %v206 = vextract.high.u32 %v204
    %v207 = vshrl.u32 %v206, 1
    %v208 = vmul.u32 %v207, 3
    %v209 = vsub.s32 %v203, %v208
    %v210 = vsub.s32 0, %v209
    %v211 = vsel %vm201, %v210, %v209
    %vm212 = vcmp.lt.s32.totalorder %v46, 0
    %v213 = vsub.s32 0, %v46
    %v214 = vsel %vm212, %v213, %v46
    %v215 = vmul.u32.u64.compose %v214, 2863311531
    %v216 = vextract.low.u32 %v215
    %v217 = vextract.high.u32 %v215
    %v218 = vshrl.u32 %v217, 1
    %v219 = vmul.u32 %v218, 3
    %v220 = vsub.s32 %v214, %v219
    %v221 = vsub.s32 0, %v220
    %v222 = vsel %vm212, %v221, %v220
    %vm223 = vcmp.lt.s32.totalorder %v47, 0
    %v224 = vsub.s32 0, %v47
    %v225 = vsel %vm223, %v224, %v47
    %v226 = vmul.u32.u64.compose %v225, 2863311531
    %v227 = vextract.low.u32 %v226
    %v228 = vextract.high.u32 %v226
    %v229 = vshrl.u32 %v228, 1
    %v230 = vmul.u32 %v229, 3
    %v231 = vsub.s32 %v225, %v230
    %v232 = vsub.s32 0, %v231
    %v233 = vsel %vm223, %v232, %v231
    %vm234 = vcmp.lt.s32.totalorder %v48, 0
    %v235 = vsub.s32 0, %v48
    %v236 = vsel %vm234, %v235, %v48
    %v237 = vmul.u32.u64.compose %v236, 2863311531
    %v238 = vextract.low.u32 %v237
    %v239 = vextract.high.u32 %v237
    %v240 = vshrl.u32 %v239, 1
    %v241 = vmul.u32 %v240, 3
    %v242 = vsub.s32 %v236, %v241
    %v243 = vsub.s32 0, %v242
    %v244 = vsel %vm234, %v243, %v242
    %vm245 = vcmp.lt.s32.totalorder %v49, 0
    %v246 = vsub.s32 0, %v49
    %v247 = vsel %vm245, %v246, %v49
    %v248 = vmul.u32.u64.compose %v247, 2863311531
    %v249 = vextract.low.u32 %v248
    %v250 = vextract.high.u32 %v248
    %v251 = vshrl.u32 %v250, 1
    %v252 = vmul.u32 %v251, 3
    %v253 = vsub.s32 %v247, %v252
    %v254 = vsub.s32 0, %v253
    %v255 = vsel %vm245, %v254, %v253
    %vm256 = vcmp.lt.s32.totalorder %v50, 0
    %v257 = vsub.s32 0, %v50
    %v258 = vsel %vm256, %v257, %v50
    %v259 = vmul.u32.u64.compose %v258, 2863311531
    %v260 = vextract.low.u32 %v259
    %v261 = vextract.high.u32 %v259
    %v262 = vshrl.u32 %v261, 1
    %v263 = vmul.u32 %v262, 3
    %v264 = vsub.s32 %v258, %v263
    %v265 = vsub.s32 0, %v264
    %v266 = vsel %vm256, %v265, %v264
    %vm267 = vcmp.lt.s32.totalorder %v51, 0
    %v268 = vsub.s32 0, %v51
    %v269 = vsel %vm267, %v268, %v51
    %v270 = vmul.u32.u64.compose %v269, 2863311531
    %v271 = vextract.low.u32 %v270
    %v272 = vextract.high.u32 %v270
    %v273 = vshrl.u32 %v272, 1
    %v274 = vmul.u32 %v273, 3
    %v275 = vsub.s32 %v269, %v274
    %v276 = vsub.s32 0, %v275
    %v277 = vsel %vm267, %v276, %v275
    %vm278 = vcmp.lt.s32.totalorder %v52, 0
    %v279 = vsub.s32 0, %v52
    %v280 = vsel %vm278, %v279, %v52
    %v281 = vmul.u32.u64.compose %v280, 2863311531
    %v282 = vextract.low.u32 %v281
    %v283 = vextract.high.u32 %v281
    %v284 = vshrl.u32 %v283, 1
    %v285 = vmul.u32 %v284, 3
    %v286 = vsub.s32 %v280, %v285
    %v287 = vsub.s32 0, %v286
    %v288 = vsel %vm278, %v287, %v286
    %vm289 = vcmp.lt.s32.totalorder %v53, 0
    %v290 = vsub.s32 0, %v53
    %v291 = vsel %vm289, %v290, %v53
    %v292 = vmul.u32.u64.compose %v291, 2863311531
    %v293 = vextract.low.u32 %v292
    %v294 = vextract.high.u32 %v292
    %v295 = vshrl.u32 %v294, 1
    %v296 = vmul.u32 %v295, 3
    %v297 = vsub.s32 %v291, %v296
    %v298 = vsub.s32 0, %v297
    %v299 = vsel %vm289, %v298, %v297
    %vm300 = vcmp.ne.s32.totalorder %v145, 0
    %vm301 = vcmp.ne.s32.totalorder %v156, 0
    %vm302 = vcmp.ne.s32.totalorder %v167, 0
    %vm303 = vcmp.ne.s32.totalorder %v178, 0
    %vm304 = vcmp.ne.s32.totalorder %v189, 0
    %vm305 = vcmp.ne.s32.totalorder %v200, 0
    %vm306 = vcmp.ne.s32.totalorder %v211, 0
    %vm307 = vcmp.ne.s32.totalorder %v222, 0
    %vm308 = vcmp.ne.s32.totalorder %v233, 0
    %vm309 = vcmp.ne.s32.totalorder %v244, 0
    %vm310 = vcmp.ne.s32.totalorder %v255, 0
    %vm311 = vcmp.ne.s32.totalorder %v266, 0
    %vm312 = vcmp.ne.s32.totalorder %v277, 0
    %vm313 = vcmp.ne.s32.totalorder %v288, 0
    %vm314 = vcmp.ne.s32.totalorder %v299, 0
    %vm315 = vcmp.lt.s32.totalorder %v145, 0
    %vm316 = vcmp.lt.s32.totalorder %v156, 0
    %vm317 = vcmp.lt.s32.totalorder %v167, 0
    %vm318 = vcmp.lt.s32.totalorder %v178, 0
    %vm319 = vcmp.lt.s32.totalorder %v189, 0
    %vm320 = vcmp.lt.s32.totalorder %v200, 0
    %vm321 = vcmp.lt.s32.totalorder %v211, 0
    %vm322 = vcmp.lt.s32.totalorder %v222, 0
    %vm323 = vcmp.lt.s32.totalorder %v233, 0
    %vm324 = vcmp.lt.s32.totalorder %v244, 0
    %vm325 = vcmp.lt.s32.totalorder %v255, 0
    %vm326 = vcmp.lt.s32.totalorder %v266, 0
    %vm327 = vcmp.lt.s32.totalorder %v277, 0
    %vm328 = vcmp.lt.s32.totalorder %v288, 0
    %vm329 = vcmp.lt.s32.totalorder %v299, 0
    %vm330 = vmand %vm315, %vm300
    %vm331 = vmand %vm316, %vm301
    %vm332 = vmand %vm317, %vm302
    %vm333 = vmand %vm318, %vm303
    %vm334 = vmand %vm319, %vm304
    %vm335 = vmand %vm320, %vm305
    %vm336 = vmand %vm321, %vm306
    %vm337 = vmand %vm322, %vm307
    %vm338 = vmand %vm323, %vm308
    %vm339 = vmand %vm324, %vm309
    %vm340 = vmand %vm325, %vm310
    %vm341 = vmand %vm326, %vm311
    %vm342 = vmand %vm327, %vm312
    %vm343 = vmand %vm328, %vm313
    %vm344 = vmand %vm329, %vm314
    %v345 = vadd.s32 %v145, 3
    %v346 = vadd.s32 %v156, 3
    %v347 = vadd.s32 %v167, 3
    %v348 = vadd.s32 %v178, 3
    %v349 = vadd.s32 %v189, 3
    %v350 = vadd.s32 %v200, 3
    %v351 = vadd.s32 %v211, 3
    %v352 = vadd.s32 %v222, 3
    %v353 = vadd.s32 %v233, 3
    %v354 = vadd.s32 %v244, 3
    %v355 = vadd.s32 %v255, 3
    %v356 = vadd.s32 %v266, 3
    %v357 = vadd.s32 %v277, 3
    %v358 = vadd.s32 %v288, 3
    %v359 = vadd.s32 %v299, 3
    %v360 = vsel %vm330, %v345, %v145
    %v361 = vsel %vm331, %v346, %v156
    %v362 = vsel %vm332, %v347, %v167
    %v363 = vsel %vm333, %v348, %v178
    %v364 = vsel %vm334, %v349, %v189
    %v365 = vsel %vm335, %v350, %v200
    %v366 = vsel %vm336, %v351, %v211
    %v367 = vsel %vm337, %v352, %v222
    %v368 = vsel %vm338, %v353, %v233
    %v369 = vsel %vm339, %v354, %v244
    %v370 = vsel %vm340, %v355, %v255
    %v371 = vsel %vm341, %v356, %v266
    %v372 = vsel %vm342, %v357, %v277
    %v373 = vsel %vm343, %v358, %v288
    %v374 = vsel %vm344, %v359, %v299
    %v375 = vadd.s32 %v360, 1
    %v376 = vadd.s32 %v361, 1
    %v377 = vadd.s32 %v362, 1
    %v378 = vadd.s32 %v363, 1
    %v379 = vadd.s32 %v364, 1
    %v380 = vadd.s32 %v365, 1
    %v381 = vadd.s32 %v366, 1
    %v382 = vadd.s32 %v367, 1
    %v383 = vadd.s32 %v368, 1
    %v384 = vadd.s32 %v369, 1
    %v385 = vadd.s32 %v370, 1
    %v386 = vadd.s32 %v371, 1
    %v387 = vadd.s32 %v372, 1
    %v388 = vadd.s32 %v373, 1
    %v389 = vadd.s32 %v374, 1
    %vm390 = vcmp.eq.s32.totalorder %v375, %v55
    %vm391 = vcmp.eq.s32.totalorder %v376, %v55
    %vm392 = vcmp.eq.s32.totalorder %v377, %v55
    %vm393 = vcmp.eq.s32.totalorder %v378, %v55
    %vm394 = vcmp.eq.s32.totalorder %v379, %v55
    %vm395 = vcmp.eq.s32.totalorder %v380, %v55
    %vm396 = vcmp.eq.s32.totalorder %v381, %v55
    %vm397 = vcmp.eq.s32.totalorder %v382, %v55
    %vm398 = vcmp.eq.s32.totalorder %v383, %v55
    %vm399 = vcmp.eq.s32.totalorder %v384, %v55
    %vm400 = vcmp.eq.s32.totalorder %v385, %v55
    %vm401 = vcmp.eq.s32.totalorder %v386, %v55
    %vm402 = vcmp.eq.s32.totalorder %v387, %v55
    %vm403 = vcmp.eq.s32.totalorder %v388, %v55
    %vm404 = vcmp.eq.s32.totalorder %v389, %v55
    %v405 = vsel %vm390, 1, 0
    %v406 = vsel %vm391, 1, 0
    %v407 = vsel %vm392, 1, 0
    %v408 = vsel %vm393, 1, 0
    %v409 = vsel %vm394, 1, 0
    %v410 = vsel %vm395, 1, 0
    %v411 = vsel %vm396, 1, 0
    %v412 = vsel %vm397, 1, 0
    %v413 = vsel %vm398, 1, 0
    %v414 = vsel %vm399, 1, 0
    %v415 = vsel %vm400, 1, 0
    %v416 = vsel %vm401, 1, 0
    %v417 = vsel %vm402, 1, 0
    %v418 = vsel %vm403, 1, 0
    %v419 = vsel %vm404, 1, 0
    %v420 = vcvt.s32.f32 %v405
    %v421 = vcvt.s32.f32 %v406
    %v422 = vcvt.s32.f32 %v407
    %v423 = vcvt.s32.f32 %v408
    %v424 = vcvt.s32.f32 %v409
    %v425 = vcvt.s32.f32 %v410
    %v426 = vcvt.s32.f32 %v411
    %v427 = vcvt.s32.f32 %v412
    %v428 = vcvt.s32.f32 %v413
    %v429 = vcvt.s32.f32 %v414
    %v430 = vcvt.s32.f32 %v415
    %v431 = vcvt.s32.f32 %v416
    %v432 = vcvt.s32.f32 %v417
    %v433 = vcvt.s32.f32 %v418
    %v434 = vcvt.s32.f32 %v419
    %436 = vrot.lane.b32.xlu0 %v36, 123
    %v437 = vpop.permute.xlu0 %436
    %439 = vrot.lane.b32.xlu0 %v36, 19
    %v440 = vpop.permute.xlu0 %439
    %442 = vrot.lane.b32.xlu0 %v36, 43
    %v443 = vpop.permute.xlu0 %442
    %445 = vrot.lane.b32.xlu0 %v36, 67
    %v446 = vpop.permute.xlu0 %445
    %448 = vrot.lane.b32.xlu0 %v36, 91
    %v449 = vpop.permute.xlu0 %448
    %vm451 = vcmask 195584
    %v452 = vsel %vm451, %v437, %v440
    %vm453 = vcmask 392192
    %v454 = vsel %vm453, %v452, %v443
    %vm455 = vcmask 588800
    %v456 = vsel %vm455, %v454, %v446
    %vm457 = vcmask 785408
    %v458 = vsel %vm457, %v456, %v449
    %v459 = vmul.f32 %v37, %v458
    %vm460 = vcmask 982016
    %v462 = vsel %vm460, %v459, 0
    %464 = vmatprep.subr.mxu0 0.0
    %465 = vmatpush1.msra.mxu0 %v120
    %466 = vmatprep.subr.mxu0 0.0
    %467 = vmatpush1.msra.mxu0 %v121
    %468 = vmatprep.subr.mxu0 0.0
    %469 = vmatpush1.msra.mxu0 %v122
    %470 = vmatprep.subr.mxu0 0.0
    %471 = vmatpush1.msra.mxu0 %v123
    %472 = vmatprep.subr.mxu0 0.0
    %473 = vmatpush1.msra.mxu0 %v124
    %474 = vmatprep.subr.mxu0 0.0
    %475 = vmatpush1.msra.mxu0 %v125
    %476 = vmatprep.subr.mxu0 0.0
    %477 = vmatpush1.msra.mxu0 %v126
    %478 = vmatprep.subr.mxu0 0.0
    %479 = vmatpush1.msra.mxu0 %v127
    %480 = vmatprep.subr.mxu0 0.0
    %481 = vmatpush1.msra.mxu0 %v128
    %482 = vmatprep.subr.mxu0 0.0
    %483 = vmatpush1.msra.mxu0 %v129
    %484 = vmatprep.subr.mxu0 0.0
    %485 = vmatpush1.msra.mxu0 %v130
    %486 = vmatprep.subr.mxu0 0.0
    %487 = vmatpush1.msra.mxu0 %v131
    %488 = vmatprep.subr.mxu0 0.0
    %489 = vmatpush1.msra.mxu0 %v132
    %490 = vmatprep.subr.mxu0 0.0
    %491 = vmatpush1.msra.mxu0 %v133
    %492 = vmatprep.subr.mxu0 0.0
    %493 = vmatpush1.msra.mxu0 %v134
    %494 = vmatprep.subr.mxu0 0.0
    %495 = vmatpush1.msra.mxu0 0.0
    %496 = vmatprep.subr.mxu0 0.0
    %497 = vmatpush1.msra.mxu0 0.0
    %498 = vmatprep.subr.mxu0 0.0
    %499 = vmatpush1.msra.mxu0 0.0
    %500 = vmatprep.subr.mxu0 0.0
    %501 = vmatpush1.msra.mxu0 0.0
    %502 = vmatprep.subr.mxu0 0.0
    %503 = vmatpush1.msra.mxu0 0.0
    %504 = vmatprep.subr.mxu0 0.0
    %505 = vmatpush1.msra.mxu0 0.0
    %506 = vmatprep.subr.mxu0 0.0
    %507 = vmatpush1.msra.mxu0 0.0
    %508 = vmatprep.subr.mxu0 0.0
    %509 = vmatpush1.msra.mxu0 0.0
    %510 = vmatprep.subr.mxu0 0.0
    %511 = vmatpush1.msra.mxu0 0.0
    %512 = vmatprep.subr.mxu0 0.0
    %513 = vmatpush1.msra.mxu0 0.0
    %514 = vmatprep.subr.mxu0 0.0
    %515 = vmatpush1.msra.mxu0 0.0
    %516 = vmatprep.subr.mxu0 0.0
    %517 = vmatpush1.msra.mxu0 0.0
    %518 = vmatprep.subr.mxu0 0.0
    %519 = vmatpush1.msra.mxu0 0.0
    %520 = vmatprep.subr.mxu0 0.0
    %521 = vmatpush1.msra.mxu0 0.0
    %522 = vmatprep.subr.mxu0 0.0
    %523 = vmatpush1.msra.mxu0 0.0
    %524 = vmatprep.subr.mxu0 0.0
    %525 = vmatpush1.msra.mxu0 0.0
    %526 = vmatprep.subr.mxu0 0.0
    %527 = vmatpush1.msra.mxu0 0.0
    %528 = vmatprep.mubr.f32.mxu0 0.0
    %529 = vmatmul.mubr.f32.gmra.mrb[0].mxu0 %v462
    %v530 = vpop.f32.mrb[0].mxu0
    %v531 = vadd.f32 0.0, %v530
    %v532 = vpop.f32.mrb[0].mxu0
    %533 = vdwg.mxu0
    %v534 = vmul.f32 %v37, %v37
    %v536 = vsel %vm460, %v534, 0
    %538 = vmatprep.subr.mxu0 0.0
    %539 = vmatpush1.msra.mxu0 %v120
    %540 = vmatprep.subr.mxu0 0.0
    %541 = vmatpush1.msra.mxu0 %v121
    %542 = vmatprep.subr.mxu0 0.0
    %543 = vmatpush1.msra.mxu0 %v122
    %544 = vmatprep.subr.mxu0 0.0
    %545 = vmatpush1.msra.mxu0 %v123
    %546 = vmatprep.subr.mxu0 0.0
    %547 = vmatpush1.msra.mxu0 %v124
    %548 = vmatprep.subr.mxu0 0.0
    %549 = vmatpush1.msra.mxu0 %v125
    %550 = vmatprep.subr.mxu0 0.0
    %551 = vmatpush1.msra.mxu0 %v126
    %552 = vmatprep.subr.mxu0 0.0
    %553 = vmatpush1.msra.mxu0 %v127
    %554 = vmatprep.subr.mxu0 0.0
    %555 = vmatpush1.msra.mxu0 %v128
    %556 = vmatprep.subr.mxu0 0.0
    %557 = vmatpush1.msra.mxu0 %v129
    %558 = vmatprep.subr.mxu0 0.0
    %559 = vmatpush1.msra.mxu0 %v130
    %560 = vmatprep.subr.mxu0 0.0
    %561 = vmatpush1.msra.mxu0 %v131
    %562 = vmatprep.subr.mxu0 0.0
    %563 = vmatpush1.msra.mxu0 %v132
    %564 = vmatprep.subr.mxu0 0.0
    %565 = vmatpush1.msra.mxu0 %v133
    %566 = vmatprep.subr.mxu0 0.0
    %567 = vmatpush1.msra.mxu0 %v134
    %568 = vmatprep.subr.mxu0 0.0
    %569 = vmatpush1.msra.mxu0 0.0
    %570 = vmatprep.subr.mxu0 0.0
    %571 = vmatpush1.msra.mxu0 0.0
    %572 = vmatprep.subr.mxu0 0.0
    %573 = vmatpush1.msra.mxu0 0.0
    %574 = vmatprep.subr.mxu0 0.0
    %575 = vmatpush1.msra.mxu0 0.0
    %576 = vmatprep.subr.mxu0 0.0
    %577 = vmatpush1.msra.mxu0 0.0
    %578 = vmatprep.subr.mxu0 0.0
    %579 = vmatpush1.msra.mxu0 0.0
    %580 = vmatprep.subr.mxu0 0.0
    %581 = vmatpush1.msra.mxu0 0.0
    %582 = vmatprep.subr.mxu0 0.0
    %583 = vmatpush1.msra.mxu0 0.0
    %584 = vmatprep.subr.mxu0 0.0
    %585 = vmatpush1.msra.mxu0 0.0
    %586 = vmatprep.subr.mxu0 0.0
    %587 = vmatpush1.msra.mxu0 0.0
    %588 = vmatprep.subr.mxu0 0.0
    %589 = vmatpush1.msra.mxu0 0.0
    %590 = vmatprep.subr.mxu0 0.0
    %591 = vmatpush1.msra.mxu0 0.0
    %592 = vmatprep.subr.mxu0 0.0
    %593 = vmatpush1.msra.mxu0 0.0
    %594 = vmatprep.subr.mxu0 0.0
    %595 = vmatpush1.msra.mxu0 0.0
    %596 = vmatprep.subr.mxu0 0.0
    %597 = vmatpush1.msra.mxu0 0.0
    %598 = vmatprep.subr.mxu0 0.0
    %599 = vmatpush1.msra.mxu0 0.0
    %600 = vmatprep.subr.mxu0 0.0
    %601 = vmatpush1.msra.mxu0 0.0
    %602 = vmatprep.mubr.f32.mxu0 0.0
    %603 = vmatmul.mubr.f32.gmra.mrb[0].mxu0 %v536
    %v604 = vpop.f32.mrb[0].mxu0
    %v605 = vadd.f32 0.0, %v604
    %v606 = vpop.f32.mrb[0].mxu0
    %607 = vdwg.mxu0
    %v608 = vmax.f32 %v605, 1e-16
    %v609 = vrsqrt.pop %v608
    %v610 = vmul.f32 %v531, %v609
    %vm611 = vcmp.ne.f32.partialorder %v610, %v610
    %v612 = vsel %vm611, -inf, %v610
    %vm613 = vcmask 35840
    %v614 = vsel %vm613, %v612, -inf
    %615 = vmax.xlane.f32.xlu0 %v614
    %v616 = vpop.xlane.xlu0 %615
    %vm617 = vcmp.ge.f32.partialorder %v612, %v616
    %v618 = vsel %vm617, %v55, 5
    %v619 = vsel %vm613, %v618, 2147483647
    %v620 = vand.u32 %v619, 65535
    %v621 = vshra.s32 %v619, 16
    %v622 = vcvt.s32.f32 %v620
    %v623 = vcvt.s32.f32 %v621
    %624 = vmin.xlane.f32.xlu0 %v623
    %v625 = vpop.xlane.xlu0 %624
    %vm626 = vcmp.eq.f32.partialorder %v623, %v625
    %v627 = vsel %vm626, %v622, inf
    %628 = vmin.xlane.f32.xlu0 %v627
    %v629 = vpop.xlane.xlu0 %628
    %v630 = vcvt.f32.s32 %v629
    %v631 = vcvt.f32.s32 %v625
    %v632 = vshll.u32 %v631, 16
    %v633 = vadd.s32 %v632, %v630
    %vm634 = vcmp.eq.s32.totalorder %v55, %v633
    %v635 = vsel %vm634, 1, 0
    %v636 = vcvt.s32.f32 %v635
    %v637 = vmul.f32 %v36, %v636
    %v638 = vsel %vm613, %v637, 0.0
    %639 = vadd.xlane.f32.xlu0 %v638
    %v640 = vpop.xlane.xlu0 %639
    %v641 = vsel %vm613, %v36, -inf
    %642 = vmax.xlane.f32.xlu0 %v641
    %v643 = vpop.xlane.xlu0 %642
    %v644 = vsub.f32 %v36, %v643
    %v645 = vmul.f32 %v644, 1.442695
    %v646 = vpow.pop %v645
    %v647 = vsel %vm613, %v646, 0.0
    %648 = vadd.xlane.f32.xlu0 %v647
    %v649 = vpop.xlane.xlu0 %648
    %v650 = vlog2.pop %v649
    %v651 = vmul.f32 %v650, 0.6931472
    %v652 = vadd.f32 %v643, %v651
    %v653 = vsub.f32 %v37, %v458
    %v654 = vand.u32 2147483647, %v653
    %vm655 = vcmp.lt.f32.partialorder %v654, 1.0
    %v656 = vmul.f32 %v653, 0.5
    %v657 = vmul.f32 %v656, %v653
    %v658 = vsub.f32 %v654, 0.5
    %v659 = vsel %vm655, %v657, %v658
    %v660 = vmul.u32 %v633, 24
    %vm661 = vcmp.ge.s32.totalorder %v55, %v660
    %v662 = vadd.s32 %v660, 24
    %vm663 = vcmp.lt.s32.totalorder %v55, %v662
    %vm664 = vmand %vm661, %vm663
    %v665 = vsel %vm664, 1, 0
    %v666 = vcvt.s32.f32 %v665
    %v667 = vmul.f32 %v659, %v666
    %v669 = vsel %vm460, %v667, 0
    %671 = vmatprep.subr.mxu0 0.0
    %672 = vmatpush1.msra.mxu0 %v420
    %673 = vmatprep.subr.mxu0 0.0
    %674 = vmatpush1.msra.mxu0 %v421
    %675 = vmatprep.subr.mxu0 0.0
    %676 = vmatpush1.msra.mxu0 %v422
    %677 = vmatprep.subr.mxu0 0.0
    %678 = vmatpush1.msra.mxu0 %v423
    %679 = vmatprep.subr.mxu0 0.0
    %680 = vmatpush1.msra.mxu0 %v424
    %681 = vmatprep.subr.mxu0 0.0
    %682 = vmatpush1.msra.mxu0 %v425
    %683 = vmatprep.subr.mxu0 0.0
    %684 = vmatpush1.msra.mxu0 %v426
    %685 = vmatprep.subr.mxu0 0.0
    %686 = vmatpush1.msra.mxu0 %v427
    %687 = vmatprep.subr.mxu0 0.0
    %688 = vmatpush1.msra.mxu0 %v428
    %689 = vmatprep.subr.mxu0 0.0
    %690 = vmatpush1.msra.mxu0 %v429
    %691 = vmatprep.subr.mxu0 0.0
    %692 = vmatpush1.msra.mxu0 %v430
    %693 = vmatprep.subr.mxu0 0.0
    %694 = vmatpush1.msra.mxu0 %v431
    %695 = vmatprep.subr.mxu0 0.0
    %696 = vmatpush1.msra.mxu0 %v432
    %697 = vmatprep.subr.mxu0 0.0
    %698 = vmatpush1.msra.mxu0 %v433
    %699 = vmatprep.subr.mxu0 0.0
    %700 = vmatpush1.msra.mxu0 %v434
    %701 = vmatprep.subr.mxu0 0.0
    %702 = vmatpush1.msra.mxu0 0.0
    %703 = vmatprep.subr.mxu0 0.0
    %704 = vmatpush1.msra.mxu0 0.0
    %705 = vmatprep.subr.mxu0 0.0
    %706 = vmatpush1.msra.mxu0 0.0
    %707 = vmatprep.subr.mxu0 0.0
    %708 = vmatpush1.msra.mxu0 0.0
    %709 = vmatprep.subr.mxu0 0.0
    %710 = vmatpush1.msra.mxu0 0.0
    %711 = vmatprep.subr.mxu0 0.0
    %712 = vmatpush1.msra.mxu0 0.0
    %713 = vmatprep.subr.mxu0 0.0
    %714 = vmatpush1.msra.mxu0 0.0
    %715 = vmatprep.subr.mxu0 0.0
    %716 = vmatpush1.msra.mxu0 0.0
    %717 = vmatprep.subr.mxu0 0.0
    %718 = vmatpush1.msra.mxu0 0.0
    %719 = vmatprep.subr.mxu0 0.0
    %720 = vmatpush1.msra.mxu0 0.0
    %721 = vmatprep.subr.mxu0 0.0
    %722 = vmatpush1.msra.mxu0 0.0
    %723 = vmatprep.subr.mxu0 0.0
    %724 = vmatpush1.msra.mxu0 0.0
    %725 = vmatprep.subr.mxu0 0.0
    %726 = vmatpush1.msra.mxu0 0.0
    %727 = vmatprep.subr.mxu0 0.0
    %728 = vmatpush1.msra.mxu0 0.0
    %729 = vmatprep.subr.mxu0 0.0
    %730 = vmatpush1.msra.mxu0 0.0
    %731 = vmatprep.subr.mxu0 0.0
    %732 = vmatpush1.msra.mxu0 0.0
    %733 = vmatprep.subr.mxu0 0.0
    %734 = vmatpush1.msra.mxu0 0.0
    %735 = vmatprep.mubr.f32.mxu0 0.0
    %736 = vmatmul.mubr.f32.gmra.mrb[0].mxu0 %v669
    %v737 = vpop.f32.mrb[0].mxu0
    %v738 = vadd.f32 0.0, %v737
    %v739 = vpop.f32.mrb[0].mxu0
    %740 = vdwg.mxu0
    %s741 = smul.u32 0, 4
    %v742 = vstv %s741
    %v743 = vadd.s32 %v39, %v742
    %vm744 = vcmp.lt.s32.totalorder %v743, 4
    %vm745 = vcmp.eq.s32.totalorder %v55, 0
    %v746 = vsub.f32 %v652, %v640
    %v747 = vsel %vm745, %v746, %v738
    %v748 = vsel %vm744, 1, 0
    %vm749 = vcmp.eq.s32.totalorder %v748, 1
    %v750 = vsel %vm749, %v747, 0.0
    %vm751 = vcmask 27648
    %v752 = vsel %vm751, %v750, 0.0
    %v753 = vrot.slane %v752, 4
    %v754 = vadd.f32 %v752, %v753
    %v755 = vrot.slane %v754, 2
    %v756 = vadd.f32 %v754, %v755
    %v757 = vrot.slane %v756, 1
    %v758 = vadd.f32 %v756, %v757
    %vm759 = vcmask 24576
    %760 = vst.msk [vmem:[#allocation7] sm:$0x1] %vm759, %v758
    // Predicated region
    $region18: #{tpu_custom_call.1} parent=1 // pred_check
      _
    $region19: #{tpu_custom_call.1} parent=1 // pred_check_branch
      %762 = sbr.rel (0) target = $region21
    $region20: #{tpu_custom_call.1} parent=1 // pred_region
      %s764 = ssub.s32 16, 16
      %765 = vsyncadd [#allocation4], %s764
      %s767 = sshll.u32 [#allocation7], 4
      %s768 = int_to_ptr.vmem [resolvable:$true] %s767
      %770 = dma.vmem_to_hbm [thread:$0]  %s768, 16, %s2, [#allocation4]
    $region21: #{tpu_custom_call.1} parent=1 // pred_fallthru
      _
    // Predicated region
    $region22: #{tpu_custom_call.1} parent=1 // pred_check
      _
    $region23: #{tpu_custom_call.1} parent=1 // pred_check_branch
      %772 = sbr.rel (0) target = $region25
    $region24: #{tpu_custom_call.1} parent=1 // pred_region
      %773 = dma.done [#allocation4], 16
    $region25: #{tpu_custom_call.1} parent=1 // pred_fallthru
      _
    %774 = vsyncpa [#allocation3], 1
    %775 = vsyncpa [#allocation6], 1
    %776 = vsyncpa [#allocation4], 1

</llo_original>
